<compile_context>
chip_gen: v7x
topology: tpu7x:2x2x1
jax: 0.10.0
libtpu: 0.0.40
codegen_flags: <defaults>
</compile_context>

<pallas_src>
import math

import jax
import jax.numpy as jnp
from jax import lax
from jax.experimental import pallas as pl
from jax.experimental.pallas import tpu as pltpu


def _round_up(v, m):
    return -(-v // m) * m


def _plan_out(out_f):
    """Output-dim tiling: avoid padding small sublane-aligned heads."""
    if out_f % 8 == 0 and out_f <= 256:
        return out_f, out_f                      # tn = out_f, no padding
    pad128 = _round_up(out_f, 128)
    tn = 256 if pad128 % 256 == 0 else 128
    return tn, pad128


def _plan_in(in_f, tk_max=2048):
    """Reduction-dim tiling: single K step when the feature dim is small."""
    pad128 = _round_up(in_f, 128)
    if pad128 <= tk_max:
        return pad128, pad128
    return tk_max, _round_up(in_f, tk_max)       # tk_max is a multiple of 128


def _baseline_matmul_kernel(x_ref, w_ref, b_ref, o_ref):
    # x_ref : (tm, tk)  f32 tile of flattened images (cast to bf16 in-kernel)
    # w_ref : (tn, tk)  bf16 tile of the (O, F) weight (not pre-transposed)
    # b_ref : (1, tn)   f32 bias tile
    # o_ref : (tm, tn)  f32 output tile, resident across the K axis (accumulator)
    k = pl.program_id(2)

    @pl.when(k == 0)
    def _():
        o_ref[...] = jnp.zeros_like(o_ref)

    # x @ w^T on the MXU: contract the F (last) dim of both tiles, f32 accumulate.
    o_ref[...] += lax.dot_general(
        x_ref[...].astype(jnp.bfloat16), w_ref[...],
        dimension_numbers=(((1,), (1,)), ((), ())),
        preferred_element_type=jnp.float32)

    @pl.when(k == pl.num_programs(2) - 1)
    def _():
        o_ref[...] += b_ref[...]


def prepare_image_baseline_params(weight, bias, *, tk_max=2048):
    """One-time param prep (hoisted out of the forward hot path).

    weight: (out, in) f32 -> bf16, padded to the kernel's tile plan.
    bias:   (out,)    f32 -> (1, pad_o) f32.
    """
    out_f, in_f = weight.shape
    _, pad_o = _plan_out(out_f)
    _, pad_f = _plan_in(in_f, tk_max)
    w_prep = jnp.pad(weight.astype(jnp.bfloat16),
                     ((0, pad_o - out_f), (0, pad_f - in_f)))     # (pad_o, pad_f)
    b_prep = jnp.pad(bias.astype(jnp.float32),
                     (0, pad_o - out_f)).reshape(1, pad_o)        # (1, pad_o)
    return w_prep, b_prep


def image_baseline_forward(x_nchw, w_prep, b_prep, *, out_dims,
                           tm_max=256, tk_max=2048):
    """x_nchw: (N, C, H, W) f32; w_prep/b_prep from prepare_image_baseline_params.

    Returns (N, out_dims) f32.
    """
    n = x_nchw.shape[0]
    x_flat = x_nchw.reshape(n, -1)                    # (N, F) — glue reshape in JAX
    in_f = x_flat.shape[1]

    tn, pad_o = _plan_out(out_dims)
    tk, pad_f = _plan_in(in_f, tk_max)
    tm = min(_round_up(n, 8), tm_max)                 # f32 x tile: sublane %8
    pad_n = _round_up(n, tm)

    # Only the activation needs per-call padding (rows + maybe F); zeros are inert.
    x_p = jnp.pad(x_flat, ((0, pad_n - n), (0, pad_f - in_f)))    # f32 (pad_n, pad_f)

    grid = (pad_n // tm, pad_o // tn, pad_f // tk)

    cost = pl.CostEstimate(
        flops=2 * pad_n * pad_f * pad_o,
        transcendentals=0,
        bytes_accessed=(x_p.size * 4
                        + w_prep.size * 2 * (pad_n // tm)   # weight re-read per M block
                        + b_prep.size * 4
                        + pad_n * pad_o * 4))

    out_padded = pl.pallas_call(
        _baseline_matmul_kernel,
        out_shape=jax.ShapeDtypeStruct((pad_n, pad_o), jnp.float32),
        grid=grid,
        in_specs=[
            pl.BlockSpec((tm, tk), lambda i, j, k: (i, k)),       # x tile (f32)
            pl.BlockSpec((tn, tk), lambda i, j, k: (j, k)),       # weight tile (O, F)
            pl.BlockSpec((1, tn), lambda i, j, k: (0, j)),        # bias tile
        ],
        out_specs=pl.BlockSpec((tm, tn), lambda i, j, k: (i, j)),
        compiler_params=pltpu.CompilerParams(
            dimension_semantics=("parallel", "parallel", "arbitrary"),
            vmem_limit_bytes=32 * 1024 * 1024),       # well under the v7x 64 MiB budget
        cost_estimate=cost,
    )(x_p, w_prep, b_prep)

    return out_padded[:n, :out_dims]


def init_linear_params(key, in_features, out_features, dtype=jnp.float32):
    """Deterministic init mirroring torch.nn.Linear defaults (kaiming-uniform-ish)."""
    k_w, k_b = jax.random.split(key)
    bound = 1.0 / math.sqrt(in_features)
    weight = jax.random.uniform(
        k_w, (out_features, in_features), dtype=dtype, minval=-bound, maxval=bound)
    bias = jax.random.uniform(
        k_b, (out_features,), dtype=dtype, minval=-bound, maxval=bound)
    return weight, bias


if __name__ == "__main__":
    key = jax.random.PRNGKey(0)
    k_x, k_p = jax.random.split(key)

    # Small shapes consistent with an image baseline head: NCHW input.
    batch, channels, spatial = 2, 4, 16
    input_dims = channels * spatial * spatial            # 1024
    output_dims = 32

    x = jax.random.normal(k_x, (batch, channels, spatial, spatial), dtype=jnp.float32)
    weight, bias = init_linear_params(k_p, input_dims, output_dims)

    # Param prep happens ONCE (cast + pad hoisted out of the forward hot path).
    w_prep, b_prep = prepare_image_baseline_params(weight, bias)

    fwd = jax.jit(image_baseline_forward, static_argnames=("out_dims",))
    out = jax.block_until_ready(fwd(x, w_prep, b_prep, out_dims=output_dims))
    assert out.shape == (batch, output_dims)

    # Reference 1: same bf16-cast operands, f32 accumulation (matches kernel path).
    x_flat = x.reshape(batch, -1)
    ref_bf16 = jnp.dot(x_flat.astype(jnp.bfloat16),
                       weight.astype(jnp.bfloat16).T,
                       preferred_element_type=jnp.float32) + bias
    assert jnp.allclose(out, ref_bf16, atol=5e-2, rtol=5e-2)

    # Reference 2 (loose): pure f32 affine baseline.
    ref_f32 = x_flat @ weight.T + bias
    assert jnp.allclose(out, ref_f32, atol=5e-1, rtol=5e-2)

    print("KERNEL_OK")
</pallas_src>

<mosaic_0001>
module attributes {stable_mosaic.version = 11 : i64} {
  func.func @_baseline_matmul_kernel(%arg0: i32, %arg1: i32, %arg2: i32, %arg3: memref<8x1024xf32, #tpu.memory_space<vmem>>, %arg4: memref<32x1024xbf16, #tpu.memory_space<vmem>>, %arg5: memref<1x32xf32, #tpu.memory_space<vmem>>, %arg6: memref<8x32xf32, #tpu.memory_space<vmem>>) attributes {dimension_semantics = [#tpu.dimension_semantics<parallel>, #tpu.dimension_semantics<parallel>, #tpu.dimension_semantics<arbitrary>], iteration_bounds = array<i64: 1, 1, 1>, scalar_prefetch = 0 : i64, scratch_operands = 0 : i64, tpu.core_type = #tpu.core_type<tc>, window_params = [{transform_indices = @transform_0, window_bounds = array<i64: 8, 1024>}, {transform_indices = @transform_1, window_bounds = array<i64: 32, 1024>}, {transform_indices = @transform_2, window_bounds = array<i64: 1, 32>}, {transform_indices = @transform_3, window_bounds = array<i64: 8, 32>}]} {
    %c0_i32 = arith.constant 0 : i32
    %0 = arith.cmpi eq, %arg2, %c0_i32 : i32
    %1 = arith.extui %0 : i1 to i32
    %c0_i32_0 = arith.constant 0 : i32
    %2 = arith.cmpi ne, %1, %c0_i32_0 : i32
    scf.if %2 {
      %cst_10 = arith.constant 0.000000e+00 : f32
      %13 = vector.broadcast %cst_10 : f32 to vector<8x32xf32>
      %c0_11 = arith.constant 0 : index
      %c0_12 = arith.constant 0 : index
      %14 = vector.load %arg6[%c0_11, %c0_12] : memref<8x32xf32, #tpu.memory_space<vmem>>, vector<8x32xf32>
      tpu.vector_store %arg6[%c0_11, %c0_12], %13 {strides = array<i32>} : memref<8x32xf32, #tpu.memory_space<vmem>>, vector<8x32xf32>,
    } else {
    }
    %c0 = arith.constant 0 : index
    %c0_1 = arith.constant 0 : index
    %3 = vector.load %arg6[%c0, %c0_1] : memref<8x32xf32, #tpu.memory_space<vmem>>, vector<8x32xf32>
    %c0_2 = arith.constant 0 : index
    %c0_3 = arith.constant 0 : index
    %4 = vector.load %arg3[%c0_2, %c0_3] : memref<8x1024xf32, #tpu.memory_space<vmem>>, vector<8x1024xf32>
    %5 = arith.truncf %4 : vector<8x1024xf32> to vector<8x1024xbf16>
    %c0_4 = arith.constant 0 : index
    %c0_5 = arith.constant 0 : index
    %6 = vector.load %arg4[%c0_4, %c0_5] : memref<32x1024xbf16, #tpu.memory_space<vmem>>, vector<32x1024xbf16>
    %cst = arith.constant dense<0.000000e+00> : vector<8x32xf32>
    %7 = tpu.matmul %5, %6, %cst {dimension_numbers = #tpu.dot_dimension_numbers<[1], [1], [0], [0], [0, 0, 1, 0], [], []>} : vector<8x1024xbf16>, vector<32x1024xbf16>, vector<8x32xf32> -> vector<8x32xf32>
    %8 = arith.addf %3, %7 : vector<8x32xf32>
    %c0_6 = arith.constant 0 : index
    %c0_7 = arith.constant 0 : index
    %9 = vector.load %arg6[%c0_6, %c0_7] : memref<8x32xf32, #tpu.memory_space<vmem>>, vector<8x32xf32>
    tpu.vector_store %arg6[%c0_6, %c0_7], %8 {strides = array<i32>} : memref<8x32xf32, #tpu.memory_space<vmem>>, vector<8x32xf32>,
    %c0_i32_8 = arith.constant 0 : i32
    %10 = arith.cmpi eq, %arg2, %c0_i32_8 : i32
    %11 = arith.extui %10 : i1 to i32
    %c0_i32_9 = arith.constant 0 : i32
    %12 = arith.cmpi ne, %11, %c0_i32_9 : i32
    scf.if %12 {
      %c0_10 = arith.constant 0 : index
      %c0_11 = arith.constant 0 : index
      %13 = vector.load %arg6[%c0_10, %c0_11] : memref<8x32xf32, #tpu.memory_space<vmem>>, vector<8x32xf32>
      %c0_12 = arith.constant 0 : index
      %c0_13 = arith.constant 0 : index
      %14 = vector.load %arg5[%c0_12, %c0_13] : memref<1x32xf32, #tpu.memory_space<vmem>>, vector<1x32xf32>
      %15 = vector.broadcast %14 : vector<1x32xf32> to vector<8x32xf32>
      %16 = arith.addf %13, %15 : vector<8x32xf32>
      %c0_14 = arith.constant 0 : index
      %c0_15 = arith.constant 0 : index
      %17 = vector.load %arg6[%c0_14, %c0_15] : memref<8x32xf32, #tpu.memory_space<vmem>>, vector<8x32xf32>
      tpu.vector_store %arg6[%c0_14, %c0_15], %16 {strides = array<i32>} : memref<8x32xf32, #tpu.memory_space<vmem>>, vector<8x32xf32>,
    } else {
    }
    return
  }
  func.func @transform_0(%arg0: i32, %arg1: i32, %arg2: i32) -> (i32, i32) {
    %c0_i32 = arith.constant 0 : i32
    return %arg0, %arg2 : i32, i32
  }
  func.func @transform_1(%arg0: i32, %arg1: i32, %arg2: i32) -> (i32, i32) {
    %c0_i32 = arith.constant 0 : i32
    return %arg1, %arg2 : i32, i32
  }
  func.func @transform_2(%arg0: i32, %arg1: i32, %arg2: i32) -> (i32, i32) {
    %c0_i32 = arith.constant 0 : i32
    %c0_i32_0 = arith.constant 0 : i32
    return %c0_i32, %arg1 : i32, i32
  }
  func.func @transform_3(%arg0: i32, %arg1: i32, %arg2: i32) -> (i32, i32) {
    %c0_i32 = arith.constant 0 : i32
    return %arg0, %arg1 : i32, i32
  }
}

</mosaic_0001>

<llo_original>
// kernel: image_baseline_forward.1
$region0: #{image_baseline_forward.1}
  #allocation0 [shape = 'u32[]', space=smem, size = 0x4, offset = 0x4, fixed_abs, tag = 'smem constant byte address 0x4 - core index']
  #allocation1 [shape = 'u32[144,128]{1,0:T(1,128)}', space=vmem, size = 0x12000, scoped, tag = 'internal scratch']
  %s0 = inlined_call_operand.vmem [shape: f32[8,1024], index: 0, kind: input, shape index: {}]
  %s1 = inlined_call_operand.vmem [shape: bf16[32,1024], index: 1, kind: input, shape index: {}]
  %s2 = inlined_call_operand.vmem [shape: f32[1,32], index: 2, kind: input, shape index: {}]
  %s3 = inlined_call_operand.vmem [shape: f32[8,32], index: 3, kind: output, shape index: {}]
  %s4 = sld [smem:[#allocation0]]
  $region30: #{image_baseline_forward.1} parent=0
    _
  %s6 = ssub.s32 1, %s4
  %s7 = scalar_select 0, %s6, %s4
  // Predicated region
  $region2: #{image_baseline_forward.1} parent=0 // pred_check
    _
  $region3: #{image_baseline_forward.1} parent=0 // pred_check_branch
    %9 = sbr.rel (0) target = $region5
  $region4: #{image_baseline_forward.1} parent=0 // pred_region
    _
  $region5: #{image_baseline_forward.1} parent=0 // pred_fallthru
    _
  // Predicated region
  $region6: #{image_baseline_forward.1} parent=0 // pred_check
    _
  $region7: #{image_baseline_forward.1} parent=0 // pred_check_branch
    %11 = sbr.rel (0) target = $region9
  $region8: #{image_baseline_forward.1} parent=0 // pred_region
    _
  $region9: #{image_baseline_forward.1} parent=0 // pred_fallthru
    _
  // Predicated region
  $region10: #{image_baseline_forward.1} parent=0 // pred_check
    _
  $region11: #{image_baseline_forward.1} parent=0 // pred_check_branch
    %13 = sbr.rel (0) target = $region13
  $region12: #{image_baseline_forward.1} parent=0 // pred_region
    _
  $region13: #{image_baseline_forward.1} parent=0 // pred_fallthru
    _
  %p15 = scmp.eq.s32.totalorder 0, 0
  // Predicated region
  $region14: #{image_baseline_forward.1} parent=0 // pred_check
    %p16 = pneg %p15
  $region15: #{image_baseline_forward.1} parent=0 // pred_check_branch
    %18 = sbr.rel (%p16) target = $region17
  $region16: #{image_baseline_forward.1} parent=0 // pred_region
    %vm19 = vcmask 261120
    %20 = vst.msk [vmem:[%s3] sm:$0xff] %vm19, 0.0
  $region17: #{image_baseline_forward.1} parent=0 // pred_fallthru
    _
  %v21 = vld [vmem:[%s3] sm:$0xff]
  %v22 = vld [vmem:[%s0] sm:$0xff]
  %v23 = vld [vmem:[%s0 + $0x8] sm:$0xff]
  %v24 = vld [vmem:[%s0 + $0x10] sm:$0xff]
  %v25 = vld [vmem:[%s0 + $0x18] sm:$0xff]
  %v26 = vld [vmem:[%s0 + $0x20] sm:$0xff]
  %v27 = vld [vmem:[%s0 + $0x28] sm:$0xff]
  %v28 = vld [vmem:[%s0 + $0x30] sm:$0xff]
  %v29 = vld [vmem:[%s0 + $0x38] sm:$0xff]
  %v30 = vpack.c.bf16 %v22, %v22
  %v31 = vpack.c.bf16 %v23, %v23
  %v32 = vpack.c.bf16 %v24, %v24
  %v33 = vpack.c.bf16 %v25, %v25
  %v34 = vpack.c.bf16 %v26, %v26
  %v35 = vpack.c.bf16 %v27, %v27
  %v36 = vpack.c.bf16 %v28, %v28
  %v37 = vpack.c.bf16 %v29, %v29
  %v38 = vld [vmem:[%s1] sm:$0xff]
  %v39 = vld [vmem:[%s1 + $0x8] sm:$0xff]
  %v40 = vld [vmem:[%s1 + $0x10] sm:$0xff]
  %v41 = vld [vmem:[%s1 + $0x18] sm:$0xff]
  %v42 = vld [vmem:[%s1 + $0x20] sm:$0xff]
  %v43 = vld [vmem:[%s1 + $0x28] sm:$0xff]
  %v44 = vld [vmem:[%s1 + $0x30] sm:$0xff]
  %v45 = vld [vmem:[%s1 + $0x38] sm:$0xff]
  %v46 = vld [vmem:[%s1 + $0x40] sm:$0xff]
  %v47 = vld [vmem:[%s1 + $0x48] sm:$0xff]
  %v48 = vld [vmem:[%s1 + $0x50] sm:$0xff]
  %v49 = vld [vmem:[%s1 + $0x58] sm:$0xff]
  %v50 = vld [vmem:[%s1 + $0x60] sm:$0xff]
  %v51 = vld [vmem:[%s1 + $0x68] sm:$0xff]
  %v52 = vld [vmem:[%s1 + $0x70] sm:$0xff]
  %v53 = vld [vmem:[%s1 + $0x78] sm:$0xff]
  %v70 = vunpack.c.l.b16 %v38
  %v71 = vunpack.c.h.b16 %v38
  %v72 = vunpack.c.l.b16 %v39
  %v73 = vunpack.c.h.b16 %v39
  %v74 = vunpack.c.l.b16 %v40
  %v75 = vunpack.c.h.b16 %v40
  %v76 = vunpack.c.l.b16 %v41
  %v77 = vunpack.c.h.b16 %v41
  %v78 = vunpack.c.l.b16 %v42
  %v79 = vunpack.c.h.b16 %v42
  %v80 = vunpack.c.l.b16 %v43
  %v81 = vunpack.c.h.b16 %v43
  %v82 = vunpack.c.l.b16 %v44
  %v83 = vunpack.c.h.b16 %v44
  %v84 = vunpack.c.l.b16 %v45
  %v85 = vunpack.c.h.b16 %v45
  %v86 = vunpack.c.l.b16 %v46
  %v87 = vunpack.c.h.b16 %v46
  %v88 = vunpack.c.l.b16 %v47
  %v89 = vunpack.c.h.b16 %v47
  %v90 = vunpack.c.l.b16 %v48
  %v91 = vunpack.c.h.b16 %v48
  %v92 = vunpack.c.l.b16 %v49
  %v93 = vunpack.c.h.b16 %v49
  %v94 = vunpack.c.l.b16 %v50
  %v95 = vunpack.c.h.b16 %v50
  %v96 = vunpack.c.l.b16 %v51
  %v97 = vunpack.c.h.b16 %v51
  %v98 = vunpack.c.l.b16 %v52
  %v99 = vunpack.c.h.b16 %v52
  %v100 = vunpack.c.l.b16 %v53
  %v101 = vunpack.c.h.b16 %v53
  %v102 = vpack.c.b16 %v78, %v70
  %v103 = vpack.c.b16 %v79, %v71
  %v104 = vpack.c.b16 %v80, %v72
  %v105 = vpack.c.b16 %v81, %v73
  %v106 = vpack.c.b16 %v82, %v74
  %v107 = vpack.c.b16 %v83, %v75
  %v108 = vpack.c.b16 %v84, %v76
  %v109 = vpack.c.b16 %v85, %v77
  %v110 = vpack.c.b16 %v94, %v86
  %v111 = vpack.c.b16 %v95, %v87
  %v112 = vpack.c.b16 %v96, %v88
  %v113 = vpack.c.b16 %v97, %v89
  %v114 = vpack.c.b16 %v98, %v90
  %v115 = vpack.c.b16 %v99, %v91
  %v116 = vpack.c.b16 %v100, %v92
  %v117 = vpack.c.b16 %v101, %v93
  %134 = vmatprep.subr.bf16.mxu0 %v103
  %135 = vmatpush1.bf16.xpose.msra.mxu0 %v102
  %136 = vmatprep.subr.bf16.mxu0 %v111
  %137 = vmatpush1.bf16.xpose.msra.mxu0 %v110
  %138 = vmatprep.subr.bf16.mxu0 0
  %139 = vmatpush1.bf16.xpose.msra.mxu0 0
  %140 = vmatprep.subr.bf16.mxu0 0
  %141 = vmatpush1.bf16.xpose.msra.mxu0 0
  %142 = vmatprep.subr.bf16.mxu0 0
  %143 = vmatpush1.bf16.xpose.msra.mxu0 0
  %144 = vmatprep.subr.bf16.mxu0 0
  %145 = vmatpush1.bf16.xpose.msra.mxu0 0
  %146 = vmatprep.subr.bf16.mxu0 0
  %147 = vmatpush1.bf16.xpose.msra.mxu0 0
  %148 = vmatprep.subr.bf16.mxu0 0
  %149 = vmatpush1.bf16.xpose.msra.mxu0 0
  %150 = vmatprep.subr.bf16.mxu0 0
  %151 = vmatpush1.bf16.xpose.msra.mxu0 0
  %152 = vmatprep.subr.bf16.mxu0 0
  %153 = vmatpush1.bf16.xpose.msra.mxu0 0
  %154 = vmatprep.subr.bf16.mxu0 0
  %155 = vmatpush1.bf16.xpose.msra.mxu0 0
  %156 = vmatprep.subr.bf16.mxu0 0
  %157 = vmatpush1.bf16.xpose.msra.mxu0 0
  %158 = vmatprep.subr.bf16.mxu0 0
  %159 = vmatpush1.bf16.xpose.msra.mxu0 0
  %160 = vmatprep.subr.bf16.mxu0 0
  %161 = vmatpush1.bf16.xpose.msra.mxu0 0
  %162 = vmatprep.subr.bf16.mxu0 0
  %163 = vmatpush1.bf16.xpose.msra.mxu0 0
  %164 = vmatprep.subr.bf16.mxu0 0
  %165 = vmatpush1.bf16.xpose.msra.mxu0 0
  %166 = vmatprep.mubr.bf16.mxu0 %v31
  %167 = vmatmul.mubr.bf16.gmra.mrb[0].mxu0 %v30
  %v168 = vpop.f32.mrb[0].mxu0
  %v169 = vadd.f32 0.0, %v168
  %v170 = vpop.f32.mrb[0].mxu0
  %v171 = vpop.f32.mrb[0].mxu0
  %v172 = vpop.f32.mrb[0].mxu0
  %173 = vdwg.mxu0
  %174 = vmatprep.subr.bf16.mxu0 %v105
  %175 = vmatpush1.bf16.xpose.msra.mxu0 %v104
  %176 = vmatprep.subr.bf16.mxu0 %v113
  %177 = vmatpush1.bf16.xpose.msra.mxu0 %v112
  %178 = vmatprep.subr.bf16.mxu0 0
  %179 = vmatpush1.bf16.xpose.msra.mxu0 0
  %180 = vmatprep.subr.bf16.mxu0 0
  %181 = vmatpush1.bf16.xpose.msra.mxu0 0
  %182 = vmatprep.subr.bf16.mxu0 0
  %183 = vmatpush1.bf16.xpose.msra.mxu0 0
  %184 = vmatprep.subr.bf16.mxu0 0
  %185 = vmatpush1.bf16.xpose.msra.mxu0 0
  %186 = vmatprep.subr.bf16.mxu0 0
  %187 = vmatpush1.bf16.xpose.msra.mxu0 0
  %188 = vmatprep.subr.bf16.mxu0 0
  %189 = vmatpush1.bf16.xpose.msra.mxu0 0
  %190 = vmatprep.subr.bf16.mxu0 0
  %191 = vmatpush1.bf16.xpose.msra.mxu0 0
  %192 = vmatprep.subr.bf16.mxu0 0
  %193 = vmatpush1.bf16.xpose.msra.mxu0 0
  %194 = vmatprep.subr.bf16.mxu0 0
  %195 = vmatpush1.bf16.xpose.msra.mxu0 0
  %196 = vmatprep.subr.bf16.mxu0 0
  %197 = vmatpush1.bf16.xpose.msra.mxu0 0
  %198 = vmatprep.subr.bf16.mxu0 0
  %199 = vmatpush1.bf16.xpose.msra.mxu0 0
  %200 = vmatprep.subr.bf16.mxu0 0
  %201 = vmatpush1.bf16.xpose.msra.mxu0 0
  %202 = vmatprep.subr.bf16.mxu0 0
  %203 = vmatpush1.bf16.xpose.msra.mxu0 0
  %204 = vmatprep.subr.bf16.mxu0 0
  %205 = vmatpush1.bf16.xpose.msra.mxu0 0
  %206 = vmatprep.mubr.bf16.mxu0 %v33
  %207 = vmatmul.mubr.bf16.gmra.mrb[0].mxu0 %v32
  %v208 = vpop.f32.mrb[0].mxu0
  %v209 = vadd.f32 %v169, %v208
  %v210 = vpop.f32.mrb[0].mxu0
  %v211 = vpop.f32.mrb[0].mxu0
  %v212 = vpop.f32.mrb[0].mxu0
  %213 = vdwg.mxu0
  %214 = vmatprep.subr.bf16.mxu0 %v107
  %215 = vmatpush1.bf16.xpose.msra.mxu0 %v106
  %216 = vmatprep.subr.bf16.mxu0 %v115
  %217 = vmatpush1.bf16.xpose.msra.mxu0 %v114
  %218 = vmatprep.subr.bf16.mxu0 0
  %219 = vmatpush1.bf16.xpose.msra.mxu0 0
  %220 = vmatprep.subr.bf16.mxu0 0
  %221 = vmatpush1.bf16.xpose.msra.mxu0 0
  %222 = vmatprep.subr.bf16.mxu0 0
  %223 = vmatpush1.bf16.xpose.msra.mxu0 0
  %224 = vmatprep.subr.bf16.mxu0 0
  %225 = vmatpush1.bf16.xpose.msra.mxu0 0
  %226 = vmatprep.subr.bf16.mxu0 0
  %227 = vmatpush1.bf16.xpose.msra.mxu0 0
  %228 = vmatprep.subr.bf16.mxu0 0
  %229 = vmatpush1.bf16.xpose.msra.mxu0 0
  %230 = vmatprep.subr.bf16.mxu0 0
  %231 = vmatpush1.bf16.xpose.msra.mxu0 0
  %232 = vmatprep.subr.bf16.mxu0 0
  %233 = vmatpush1.bf16.xpose.msra.mxu0 0
  %234 = vmatprep.subr.bf16.mxu0 0
  %235 = vmatpush1.bf16.xpose.msra.mxu0 0
  %236 = vmatprep.subr.bf16.mxu0 0
  %237 = vmatpush1.bf16.xpose.msra.mxu0 0
  %238 = vmatprep.subr.bf16.mxu0 0
  %239 = vmatpush1.bf16.xpose.msra.mxu0 0
  %240 = vmatprep.subr.bf16.mxu0 0
  %241 = vmatpush1.bf16.xpose.msra.mxu0 0
  %242 = vmatprep.subr.bf16.mxu0 0
  %243 = vmatpush1.bf16.xpose.msra.mxu0 0
  %244 = vmatprep.subr.bf16.mxu0 0
  %245 = vmatpush1.bf16.xpose.msra.mxu0 0
  %246 = vmatprep.mubr.bf16.mxu0 %v35
  %247 = vmatmul.mubr.bf16.gmra.mrb[0].mxu0 %v34
  %v248 = vpop.f32.mrb[0].mxu0
  %v249 = vadd.f32 %v209, %v248
  %v250 = vpop.f32.mrb[0].mxu0
  %v251 = vpop.f32.mrb[0].mxu0
  %v252 = vpop.f32.mrb[0].mxu0
  %253 = vdwg.mxu0
  %254 = vmatprep.subr.bf16.mxu0 %v109
  %255 = vmatpush1.bf16.xpose.msra.mxu0 %v108
  %256 = vmatprep.subr.bf16.mxu0 %v117
  %257 = vmatpush1.bf16.xpose.msra.mxu0 %v116
  %258 = vmatprep.subr.bf16.mxu0 0
  %259 = vmatpush1.bf16.xpose.msra.mxu0 0
  %260 = vmatprep.subr.bf16.mxu0 0
  %261 = vmatpush1.bf16.xpose.msra.mxu0 0
  %262 = vmatprep.subr.bf16.mxu0 0
  %263 = vmatpush1.bf16.xpose.msra.mxu0 0
  %264 = vmatprep.subr.bf16.mxu0 0
  %265 = vmatpush1.bf16.xpose.msra.mxu0 0
  %266 = vmatprep.subr.bf16.mxu0 0
  %267 = vmatpush1.bf16.xpose.msra.mxu0 0
  %268 = vmatprep.subr.bf16.mxu0 0
  %269 = vmatpush1.bf16.xpose.msra.mxu0 0
  %270 = vmatprep.subr.bf16.mxu0 0
  %271 = vmatpush1.bf16.xpose.msra.mxu0 0
  %272 = vmatprep.subr.bf16.mxu0 0
  %273 = vmatpush1.bf16.xpose.msra.mxu0 0
  %274 = vmatprep.subr.bf16.mxu0 0
  %275 = vmatpush1.bf16.xpose.msra.mxu0 0
  %276 = vmatprep.subr.bf16.mxu0 0
  %277 = vmatpush1.bf16.xpose.msra.mxu0 0
  %278 = vmatprep.subr.bf16.mxu0 0
  %279 = vmatpush1.bf16.xpose.msra.mxu0 0
  %280 = vmatprep.subr.bf16.mxu0 0
  %281 = vmatpush1.bf16.xpose.msra.mxu0 0
  %282 = vmatprep.subr.bf16.mxu0 0
  %283 = vmatpush1.bf16.xpose.msra.mxu0 0
  %284 = vmatprep.subr.bf16.mxu0 0
  %285 = vmatpush1.bf16.xpose.msra.mxu0 0
  %286 = vmatprep.mubr.bf16.mxu0 %v37
  %287 = vmatmul.mubr.bf16.gmra.mrb[0].mxu0 %v36
  %v288 = vpop.f32.mrb[0].mxu0
  %v289 = vadd.f32 %v249, %v288
  %v290 = vpop.f32.mrb[0].mxu0
  %v291 = vpop.f32.mrb[0].mxu0
  %v292 = vpop.f32.mrb[0].mxu0
  %293 = vdwg.mxu0
  %v294 = vadd.f32 %v21, %v289
  %vm295 = vcmask 261120
  %296 = vst.msk [vmem:[%s3] sm:$0xff] %vm295, %v294
  // Predicated region
  $region18: #{image_baseline_forward.1} parent=0 // pred_check
    %p297 = pneg %p15
  $region19: #{image_baseline_forward.1} parent=0 // pred_check_branch
    %299 = sbr.rel (%p297) target = $region21
  $region20: #{image_baseline_forward.1} parent=0 // pred_region
    %v300 = vld [vmem:[%s3] sm:$0xff]
    %v301 = vld [vmem:[%s2] sm:$0x1]
    %v303 = vlaneseq
    %v304 = vshrl.u32 %v303, 7
    %v305 = vsub.s32 0, %v304
    %v306 = vrot.slane %v301, %v305
    %v308 = vadd.f32 %v300, %v306
    %309 = vst.msk [vmem:[%s3] sm:$0xff] %vm295, %v308
  $region21: #{image_baseline_forward.1} parent=0 // pred_fallthru
    _
  // Predicated region
  $region22: #{image_baseline_forward.1} parent=0 // pred_check
    _
  $region23: #{image_baseline_forward.1} parent=0 // pred_check_branch
    %311 = sbr.rel (0) target = $region25
  $region24: #{image_baseline_forward.1} parent=0 // pred_region
    _
  $region25: #{image_baseline_forward.1} parent=0 // pred_fallthru
    _
  // Predicated region
  $region26: #{image_baseline_forward.1} parent=0 // pred_check
    _
  $region27: #{image_baseline_forward.1} parent=0 // pred_check_branch
    %313 = sbr.rel (0) target = $region29
  $region28: #{image_baseline_forward.1} parent=0 // pred_region
    _
  $region29: #{image_baseline_forward.1} parent=0 // pred_fallthru
    _

</llo_original>
